<compile_context>
chip_gen: v7x
topology: tpu7x:2x2x1
jax: 0.10.0
libtpu: 0.0.40
codegen_flags: <defaults>
</compile_context>

<pallas_src>
import functools
import math

import jax
import jax.numpy as jnp
from jax.experimental import pallas as pl
from jax.experimental.pallas import tpu as pltpu

NEG_SLOPE = 0.2        # GATConv default LeakyReLU negative_slope
MASK_VAL = -1e30       # "-inf" for masked (non-edge) attention logits
VMEM_LIMIT = 64 * 1024 * 1024


def _round_up(x, m):
    return ((x + m - 1) // m) * m


def _block_diag_att(att):
    """[heads, f_out] -> block-diagonal [heads*f_out, heads] so that
    xp @ A gives a[n, h] = sum_f xp[n, h*f_out + f] * att[h, f]."""
    heads, f_out = att.shape
    eye = jnp.eye(heads, dtype=att.dtype)
    return (att[:, :, None] * eye[:, None, :]).reshape(heads * f_out, heads)


# ---------------------------------------------------------------------------
# Kernel 1: linear transform + attention coefficients (tiled over nodes).
# ---------------------------------------------------------------------------
def _gat_linear_kernel(x_ref, w_ref, asrc_w_ref, adst_w_ref,
                       xp_ref, asrc_ref, adst_ref):
    x = x_ref[...].astype(jnp.bfloat16)
    w = w_ref[...].astype(jnp.bfloat16)
    xp = jnp.dot(x, w, preferred_element_type=jnp.float32)      # [T, H*F] f32
    xp_ref[...] = xp.astype(jnp.bfloat16)
    # One MXU contraction per coefficient (block-diagonal att weights),
    # computed from the f32 accumulator so the logits stay accurate.
    asrc_ref[...] = jnp.dot(xp, asrc_w_ref[...],
                            preferred_element_type=jnp.float32)  # [T, H]
    adst_ref[...] = jnp.dot(xp, adst_w_ref[...],
                            preferred_element_type=jnp.float32)  # [T, H]


def _gat_linear(x, w, asrc_w, adst_w, *, heads, f_out, tile_n):
    n_pad, f_in = x.shape
    hf = heads * f_out
    grid = (n_pad // tile_n,)
    return pl.pallas_call(
        _gat_linear_kernel,
        out_shape=(
            jax.ShapeDtypeStruct((n_pad, hf), jnp.bfloat16),     # xp
            jax.ShapeDtypeStruct((n_pad, heads), jnp.float32),   # a_src
            jax.ShapeDtypeStruct((n_pad, heads), jnp.float32),   # a_dst
        ),
        grid_spec=pltpu.PrefetchScalarGridSpec(
            num_scalar_prefetch=0,
            grid=grid,
            in_specs=[
                pl.BlockSpec((tile_n, f_in), lambda i: (i, 0)),
                pl.BlockSpec((f_in, hf), lambda i: (0, 0)),
                pl.BlockSpec((hf, heads), lambda i: (0, 0)),
                pl.BlockSpec((hf, heads), lambda i: (0, 0)),
            ],
            out_specs=(
                pl.BlockSpec((tile_n, hf), lambda i: (i, 0)),
                pl.BlockSpec((tile_n, heads), lambda i: (i, 0)),
                pl.BlockSpec((tile_n, heads), lambda i: (i, 0)),
            ),
        ),
        compiler_params=pltpu.CompilerParams(
            dimension_semantics=("parallel",),
            vmem_limit_bytes=VMEM_LIMIT),
    )(x, w, asrc_w, adst_w)


# ---------------------------------------------------------------------------
# Kernel 2: flash-style masked attention softmax + aggregation.
# grid = (dst_tiles, src_tiles); online softmax state in VMEM scratch.
# ---------------------------------------------------------------------------
def _gat_attention_kernel(adj_ref, adst_ref, asrct_ref, xp_ref, bias_ref,
                          out_ref, m_scr, l_scr, acc_scr,
                          *, heads, f_out, concat, apply_elu):
    j = pl.program_id(1)

    @pl.when(j == 0)
    def _init():
        m_scr[...] = jnp.full(m_scr.shape, MASK_VAL, jnp.float32)
        l_scr[...] = jnp.zeros(l_scr.shape, jnp.float32)
        acc_scr[...] = jnp.zeros(acc_scr.shape, jnp.float32)

    edge = adj_ref[...] > 0                       # [TD, TS] (adj is bf16 0/1)
    a_dst = adst_ref[...]                         # [TD, heads] f32
    a_src_t = asrct_ref[...]                      # [heads, TS] f32
    xp_b = xp_ref[...].astype(jnp.float32)        # [TS, heads*f_out]

    for h in range(heads):                        # static, heads is tiny
        hs, he = h * f_out, (h + 1) * f_out
        # logits s[i, j] = a_dst[i] + a_src[j]; fused LeakyReLU + edge mask.
        s = a_dst[:, h:h + 1] + a_src_t[h:h + 1, :]              # [TD, TS]
        s = jnp.where(edge, jnp.maximum(s, NEG_SLOPE * s), MASK_VAL)

        m_old = m_scr[h]                                         # [TD, 1]
        m_new = jnp.maximum(m_old, jnp.max(s, axis=1, keepdims=True))
        alpha = jnp.exp(m_old - m_new)
        p = jnp.exp(s - m_new)                                   # unnormalized
        l_scr[h] = alpha * l_scr[h] + jnp.sum(p, axis=1, keepdims=True)
        acc_scr[h] = alpha * acc_scr[h] + jnp.dot(
            p, xp_b[:, hs:he], preferred_element_type=jnp.float32)
        m_scr[h] = m_new

    @pl.when(j == pl.num_programs(1) - 1)
    def _finalize():
        # Deferred softmax normalization (EUP reciprocal on [TD, 1] only).
        outs = [acc_scr[h] * pl.reciprocal(l_scr[h], approx=True)
                for h in range(heads)]
        if concat:
            out = jnp.concatenate(outs, axis=-1) if heads > 1 else outs[0]
        else:
            out = outs[0]
            for h in range(1, heads):
                out = out + outs[h]
            out = out * (1.0 / heads)
        out = out + bias_ref[...]
        if apply_elu:
            out = jnp.where(out > 0, out, jnp.exp(out) - 1.0)    # fused ELU
        out_ref[...] = out.astype(out_ref.dtype)


def _gat_attention(adj, a_dst, a_src_t, xp, bias, *, heads, f_out, concat,
                   apply_elu, tile_dst, tile_src):
    n_pad = adj.shape[0]
    hf = heads * f_out
    out_dim = hf if concat else f_out
    grid = (n_pad // tile_dst, n_pad // tile_src)
    kernel = functools.partial(_gat_attention_kernel, heads=heads, f_out=f_out,
                               concat=concat, apply_elu=apply_elu)
    return pl.pallas_call(
        kernel,
        out_shape=jax.ShapeDtypeStruct((n_pad, out_dim), jnp.float32),
        grid_spec=pltpu.PrefetchScalarGridSpec(
            num_scalar_prefetch=0,
            grid=grid,
            in_specs=[
                pl.BlockSpec((tile_dst, tile_src), lambda i, j: (i, j)),  # adj
                pl.BlockSpec((tile_dst, heads), lambda i, j: (i, 0)),     # a_dst
                pl.BlockSpec((heads, tile_src), lambda i, j: (0, j)),     # a_src^T
                pl.BlockSpec((tile_src, hf), lambda i, j: (j, 0)),        # xp
                pl.BlockSpec((1, out_dim), lambda i, j: (0, 0)),          # bias
            ],
            out_specs=pl.BlockSpec((tile_dst, out_dim), lambda i, j: (i, 0)),
            scratch_shapes=[
                pltpu.VMEM((heads, tile_dst, 1), jnp.float32),      # running max
                pltpu.VMEM((heads, tile_dst, 1), jnp.float32),      # running denom
                pltpu.VMEM((heads, tile_dst, f_out), jnp.float32),  # f32 acc
            ],
        ),
        compiler_params=pltpu.CompilerParams(
            dimension_semantics=("parallel", "arbitrary"),
            vmem_limit_bytes=VMEM_LIMIT),
    )(adj, a_dst, a_src_t, xp, bias)


# ---------------------------------------------------------------------------
# Layer / model glue (plain JAX: padding, dense mask build, slicing).
# ---------------------------------------------------------------------------
def gat_conv(x, w, att_src, att_dst, bias, adj, *, heads, f_out, concat,
             apply_elu, tile_dst, tile_src):
    asrc_w = _block_diag_att(att_src)     # [H*F, heads]
    adst_w = _block_diag_att(att_dst)
    xp, a_src, a_dst = _gat_linear(x, w, asrc_w, adst_w,
                                   heads=heads, f_out=f_out,
                                   tile_n=tile_src)
    out_dim = heads * f_out if concat else f_out
    a_src_t = jnp.transpose(a_src)        # tiny [H, N_pad] layout plumbing
    return _gat_attention(adj, a_dst, a_src_t, xp, bias.reshape(1, out_dim),
                          heads=heads, f_out=f_out, concat=concat,
                          apply_elu=apply_elu,
                          tile_dst=tile_dst, tile_src=tile_src)


def build_adjacency(edge_index, n, n_pad):
    """adj[dst, src] = 1 for each edge src -> dst, plus self loops (bf16)."""
    src, dst = edge_index[0], edge_index[1]
    adj = jnp.zeros((n_pad, n_pad), jnp.float32)
    adj = adj.at[dst, src].set(1.0)
    ids = jnp.arange(n)
    adj = adj.at[ids, ids].set(1.0)       # add_self_loops (real nodes only)
    return adj.astype(jnp.bfloat16)


def gat_forward(node_feat, edge_index, params, *, heads, out_heads,
                tile_dst=128, tile_src=128):
    """Eval-mode forward of the 2-layer GAT (dropout = identity, no BN)."""
    n, f_in = node_feat.shape
    n_pad = _round_up(n, math.lcm(tile_dst, tile_src))
    assert n_pad % tile_dst == 0 and n_pad % tile_src == 0

    adj = build_adjacency(edge_index, n, n_pad)
    valid = (jnp.arange(n_pad) < n).astype(jnp.float32)[:, None]
    x = jnp.pad(node_feat, ((0, n_pad - n), (0, 0)))

    # layer 1: GATConv(in, hidden, heads, concat=True) + fused ELU
    w1, as1, ad1, b1 = params["conv1"]
    x = gat_conv(x, w1, as1, ad1, b1, adj, heads=heads, f_out=as1.shape[1],
                 concat=True, apply_elu=True,
                 tile_dst=tile_dst, tile_src=tile_src)
    x = x * valid   # keep padded rows at zero between layers

    # layer 2: GATConv(hidden*heads, out, out_heads, concat=False)
    w2, as2, ad2, b2 = params["conv2"]
    x = gat_conv(x, w2, as2, ad2, b2, adj, heads=out_heads, f_out=as2.shape[1],
                 concat=False, apply_elu=False,
                 tile_dst=tile_dst, tile_src=tile_src)
    return x[:n]


# ---------------------------------------------------------------------------
# Pure-JAX dense reference (for correctness checking of the tiled kernel).
# ---------------------------------------------------------------------------
def _gat_conv_ref(x, w, att_src, att_dst, bias, adj, *, heads, f_out, concat,
                  apply_elu):
    xp = x @ w
    outs = []
    for h in range(heads):
        xph = xp[:, h * f_out:(h + 1) * f_out]
        a_src = xph @ att_src[h]
        a_dst = xph @ att_dst[h]
        s = a_dst[:, None] + a_src[None, :]
        s = jnp.where(s > 0, s, NEG_SLOPE * s)
        s = jnp.where(adj > 0, s, -jnp.inf)
        attn = jax.nn.softmax(s, axis=1)
        outs.append(attn @ xph)
    if concat:
        out = jnp.concatenate(outs, axis=1)
    else:
        out = sum(outs) / heads
    out = out + bias[None, :]
    if apply_elu:
        out = jnp.where(out > 0, out, jnp.exp(out) - 1.0)
    return out


def gat_forward_ref(node_feat, edge_index, params, *, heads, out_heads):
    n = node_feat.shape[0]
    src, dst = edge_index[0], edge_index[1]
    adj = jnp.zeros((n, n), jnp.float32).at[dst, src].set(1.0)
    adj = jnp.maximum(adj, jnp.eye(n, dtype=jnp.float32))
    w1, as1, ad1, b1 = params["conv1"]
    x = _gat_conv_ref(node_feat, w1, as1, ad1, b1, adj, heads=heads,
                      f_out=as1.shape[1], concat=True, apply_elu=True)
    w2, as2, ad2, b2 = params["conv2"]
    return _gat_conv_ref(x, w2, as2, ad2, b2, adj, heads=out_heads,
                         f_out=as2.shape[1], concat=False, apply_elu=False)


def glorot(key, shape):
    limit = (6.0 / (shape[0] + shape[-1])) ** 0.5
    return jax.random.uniform(key, shape, jnp.float32, -limit, limit)


if __name__ == "__main__":
    N, IN_C, HID, OUT_C = 16, 8, 8, 4
    HEADS, OUT_HEADS, E = 2, 1, 48

    key = jax.random.PRNGKey(0)
    k = jax.random.split(key, 12)

    node_feat = jax.random.normal(k[0], (N, IN_C), jnp.float32)
    src = jax.random.randint(k[1], (E,), 0, N)
    dst = jax.random.randint(k[2], (E,), 0, N)
    edge_index = jnp.stack([src, dst])   # [2, E], row0 = source, row1 = target

    params = {
        "conv1": (glorot(k[3], (IN_C, HEADS * HID)),        # lin weight
                  glorot(k[4], (HEADS, HID)),               # att_src
                  glorot(k[5], (HEADS, HID)),               # att_dst
                  jnp.zeros((HEADS * HID,), jnp.float32)),  # bias (concat=True)
        "conv2": (glorot(k[6], (HEADS * HID, OUT_HEADS * OUT_C)),
                  glorot(k[7], (OUT_HEADS, OUT_C)),
                  glorot(k[8], (OUT_HEADS, OUT_C)),
                  jnp.zeros((OUT_C,), jnp.float32)),        # bias (concat=False)
    }

    # Small demo graph (single-tile grid after padding to 128).
    out = gat_forward(node_feat, edge_index, params,
                      heads=HEADS, out_heads=OUT_HEADS)
    out = jax.block_until_ready(out)
    assert out.shape == (N, OUT_C) and out.dtype == jnp.float32
    ref = gat_forward_ref(node_feat, edge_index, params,
                          heads=HEADS, out_heads=OUT_HEADS)
    assert bool(jnp.allclose(out, ref, rtol=5e-2, atol=5e-2)), "mismatch (N=16)"

    # Larger graph: pads to 256 -> 2x2 grid, exercising the multi-tile
    # online-softmax (running max / denom) path against the dense reference.
    N2, E2 = 200, 800
    x2 = jax.random.normal(k[9], (N2, IN_C), jnp.float32)
    src2 = jax.random.randint(k[10], (E2,), 0, N2)
    dst2 = jax.random.randint(k[11], (E2,), 0, N2)
    ei2 = jnp.stack([src2, dst2])
    out2 = jax.block_until_ready(
        gat_forward(x2, ei2, params, heads=HEADS, out_heads=OUT_HEADS))
    ref2 = gat_forward_ref(x2, ei2, params, heads=HEADS, out_heads=OUT_HEADS)
    assert out2.shape == (N2, OUT_C)
    assert bool(jnp.allclose(out2, ref2, rtol=5e-2, atol=5e-2)), "mismatch (N=200)"

    print("KERNEL_OK")
</pallas_src>

<mosaic_0001>
module attributes {stable_mosaic.version = 11 : i64} {
  func.func @_gat_linear_kernel(%arg0: i32, %arg1: memref<128x8xf32, #tpu.memory_space<vmem>>, %arg2: memref<8x16xf32, #tpu.memory_space<vmem>>, %arg3: memref<16x2xf32, #tpu.memory_space<vmem>>, %arg4: memref<16x2xf32, #tpu.memory_space<vmem>>, %arg5: memref<128x16xbf16, #tpu.memory_space<vmem>>, %arg6: memref<128x2xf32, #tpu.memory_space<vmem>>, %arg7: memref<128x2xf32, #tpu.memory_space<vmem>>) attributes {dimension_semantics = [#tpu.dimension_semantics<parallel>], iteration_bounds = array<i64: 1>, scalar_prefetch = 0 : i64, scratch_operands = 0 : i64, tpu.core_type = #tpu.core_type<tc>, window_params = [{transform_indices = @transform_0, window_bounds = array<i64: 128, 8>}, {pipeline_mode = #tpu.pipeline_mode<synchronous>, transform_indices = @transform_1, window_bounds = array<i64: 8, 16>}, {pipeline_mode = #tpu.pipeline_mode<synchronous>, transform_indices = @transform_2, window_bounds = array<i64: 16, 2>}, {pipeline_mode = #tpu.pipeline_mode<synchronous>, transform_indices = @transform_3, window_bounds = array<i64: 16, 2>}, {transform_indices = @transform_4, window_bounds = array<i64: 128, 16>}, {transform_indices = @transform_5, window_bounds = array<i64: 128, 2>}, {transform_indices = @transform_6, window_bounds = array<i64: 128, 2>}]} {
    %c0 = arith.constant 0 : index
    %c0_0 = arith.constant 0 : index
    %0 = vector.load %arg1[%c0, %c0_0] : memref<128x8xf32, #tpu.memory_space<vmem>>, vector<128x8xf32>
    %1 = arith.truncf %0 : vector<128x8xf32> to vector<128x8xbf16>
    %c0_1 = arith.constant 0 : index
    %c0_2 = arith.constant 0 : index
    %2 = vector.load %arg2[%c0_1, %c0_2] : memref<8x16xf32, #tpu.memory_space<vmem>>, vector<8x16xf32>
    %3 = arith.truncf %2 : vector<8x16xf32> to vector<8x16xbf16>
    %cst = arith.constant dense<0.000000e+00> : vector<128x16xf32>
    %4 = tpu.matmul %1, %3, %cst {dimension_numbers = #tpu.dot_dimension_numbers<[1], [0], [0], [1], [0, 0, 1, 1], [], []>} : vector<128x8xbf16>, vector<8x16xbf16>, vector<128x16xf32> -> vector<128x16xf32>
    %5 = arith.truncf %4 : vector<128x16xf32> to vector<128x16xbf16>
    %c0_3 = arith.constant 0 : index
    %c0_4 = arith.constant 0 : index
    %6 = vector.load %arg5[%c0_3, %c0_4] : memref<128x16xbf16, #tpu.memory_space<vmem>>, vector<128x16xbf16>
    tpu.vector_store %arg5[%c0_3, %c0_4], %5 {strides = array<i32>} : memref<128x16xbf16, #tpu.memory_space<vmem>>, vector<128x16xbf16>,
    %c0_5 = arith.constant 0 : index
    %c0_6 = arith.constant 0 : index
    %7 = vector.load %arg3[%c0_5, %c0_6] : memref<16x2xf32, #tpu.memory_space<vmem>>, vector<16x2xf32>
    %cst_7 = arith.constant dense<0.000000e+00> : vector<128x2xf32>
    %8 = tpu.matmul %4, %7, %cst_7 {dimension_numbers = #tpu.dot_dimension_numbers<[1], [0], [0], [1], [0, 0, 1, 1], [], []>} : vector<128x16xf32>, vector<16x2xf32>, vector<128x2xf32> -> vector<128x2xf32>
    %c0_8 = arith.constant 0 : index
    %c0_9 = arith.constant 0 : index
    %9 = vector.load %arg6[%c0_8, %c0_9] : memref<128x2xf32, #tpu.memory_space<vmem>>, vector<128x2xf32>
    tpu.vector_store %arg6[%c0_8, %c0_9], %8 {strides = array<i32>} : memref<128x2xf32, #tpu.memory_space<vmem>>, vector<128x2xf32>,
    %c0_10 = arith.constant 0 : index
    %c0_11 = arith.constant 0 : index
    %10 = vector.load %arg4[%c0_10, %c0_11] : memref<16x2xf32, #tpu.memory_space<vmem>>, vector<16x2xf32>
    %cst_12 = arith.constant dense<0.000000e+00> : vector<128x2xf32>
    %11 = tpu.matmul %4, %10, %cst_12 {dimension_numbers = #tpu.dot_dimension_numbers<[1], [0], [0], [1], [0, 0, 1, 1], [], []>} : vector<128x16xf32>, vector<16x2xf32>, vector<128x2xf32> -> vector<128x2xf32>
    %c0_13 = arith.constant 0 : index
    %c0_14 = arith.constant 0 : index
    %12 = vector.load %arg7[%c0_13, %c0_14] : memref<128x2xf32, #tpu.memory_space<vmem>>, vector<128x2xf32>
    tpu.vector_store %arg7[%c0_13, %c0_14], %11 {strides = array<i32>} : memref<128x2xf32, #tpu.memory_space<vmem>>, vector<128x2xf32>,
    return
  }
  func.func @transform_0(%arg0: i32) -> (i32, i32) {
    %c0_i32 = arith.constant 0 : i32
    %c0_i32_0 = arith.constant 0 : i32
    return %arg0, %c0_i32 : i32, i32
  }
  func.func @transform_1(%arg0: i32) -> (i32, i32) {
    %c0_i32 = arith.constant 0 : i32
    %c0_i32_0 = arith.constant 0 : i32
    %c0_i32_1 = arith.constant 0 : i32
    return %c0_i32, %c0_i32_0 : i32, i32
  }
  func.func @transform_2(%arg0: i32) -> (i32, i32) {
    %c0_i32 = arith.constant 0 : i32
    %c0_i32_0 = arith.constant 0 : i32
    %c0_i32_1 = arith.constant 0 : i32
    return %c0_i32, %c0_i32_0 : i32, i32
  }
  func.func @transform_3(%arg0: i32) -> (i32, i32) {
    %c0_i32 = arith.constant 0 : i32
    %c0_i32_0 = arith.constant 0 : i32
    %c0_i32_1 = arith.constant 0 : i32
    return %c0_i32, %c0_i32_0 : i32, i32
  }
  func.func @transform_4(%arg0: i32) -> (i32, i32) {
    %c0_i32 = arith.constant 0 : i32
    %c0_i32_0 = arith.constant 0 : i32
    return %arg0, %c0_i32 : i32, i32
  }
  func.func @transform_5(%arg0: i32) -> (i32, i32) {
    %c0_i32 = arith.constant 0 : i32
    %c0_i32_0 = arith.constant 0 : i32
    return %arg0, %c0_i32 : i32, i32
  }
  func.func @transform_6(%arg0: i32) -> (i32, i32) {
    %c0_i32 = arith.constant 0 : i32
    %c0_i32_0 = arith.constant 0 : i32
    return %arg0, %c0_i32 : i32, i32
  }
}

</mosaic_0001>

<llo_original>
// kernel: tpu_custom_call.1
$region0: #{tpu_custom_call.1}
  #allocation0 [shape = 'u32[]', space=smem, size = 0x4, offset = 0x4, fixed_abs, tag = 'smem constant byte address 0x4 - core index']
  #allocation1 [shape = 'u32[144,128]{1,0:T(1,128)}', space=vmem, size = 0x12000, scoped, tag = 'internal scratch']
  %s0 = inlined_call_operand.hbm [shape: f32[128,8], index: 0, kind: input, shape index: {}]
  %s1 = inlined_call_operand.hbm [shape: f32[8,16], index: 1, kind: input, shape index: {}]
  %s2 = inlined_call_operand.hbm [shape: f32[16,2], index: 2, kind: input, shape index: {}]
  %s3 = inlined_call_operand.hbm [shape: f32[16,2], index: 3, kind: input, shape index: {}]
  %s4 = inlined_call_operand.hbm [shape: bf16[128,16], index: 4, kind: output, shape index: {0}]
  %s5 = inlined_call_operand.hbm [shape: f32[128,2], index: 5, kind: output, shape index: {1}]
  %s6 = inlined_call_operand.hbm [shape: f32[128,2], index: 6, kind: output, shape index: {2}]
  %7 = xla_tuple %s4, %s5, %s6
  %s8 = sld [smem:[#allocation0]]
  $region58: #{tpu_custom_call.1} parent=0
    _
  %s10 = ssub.s32 1, %s8
  %s11 = scalar_select 0, %s10, %s8
  $region1: #{tpu_custom_call.1} parent=0
    #allocation2 [shape = 'u8[65536]{0}', space=vmem, size = 0x10000, scoped, tag = 'input window, operand 0, single buffered']
    #allocation3 [shape = 's32[1]{0}', space=sflag, size = 0x4, scoped, tag = 'scoped memory for tpu_custom_call.1']
    #allocation4 [shape = 's32[1]{0}', space=sflag, size = 0x4, scoped, tag = 'scoped memory for tpu_custom_call.1']
    #allocation5 [shape = 'u8[4096]{0}', space=vmem, size = 0x1000, scoped, tag = 'input window, operand 1, single buffered']
    #allocation6 [shape = 's32[1]{0}', space=sflag, size = 0x4, scoped, tag = 'scoped memory for tpu_custom_call.1']
    #allocation7 [shape = 'u8[8192]{0}', space=vmem, size = 0x2000, scoped, tag = 'input window, operand 2, single buffered']
    #allocation8 [shape = 'u8[8192]{0}', space=vmem, size = 0x2000, scoped, tag = 'input window, operand 3, single buffered']
    #allocation9 [shape = 's32[1]{0}', space=sflag, size = 0x4, scoped, tag = 'scoped memory for tpu_custom_call.1']
    #allocation10 [shape = 'u8[32768]{0}', space=vmem, size = 0x8000, scoped, tag = 'output window, operand 0, single buffered']
    #allocation11 [shape = 'u8[65536]{0}', space=vmem, size = 0x10000, scoped, tag = 'output window, operand 1, single buffered']
    #allocation12 [shape = 's32[1]{0}', space=sflag, size = 0x4, scoped, tag = 'scoped memory for tpu_custom_call.1']
    #allocation13 [shape = 'u8[65536]{0}', space=vmem, size = 0x10000, scoped, tag = 'output window, operand 2, single buffered']
    %12 = vsyncpa [#allocation3], 0
    %13 = vsyncpa [#allocation6], 0
    %14 = vsyncpa [#allocation9], 0
    %15 = vsyncpa [#allocation4], 0
    %16 = vsyncpa [#allocation12], 0
    // Predicated region
    $region2: #{tpu_custom_call.1} parent=1 // pred_check
      _
    $region3: #{tpu_custom_call.1} parent=1 // pred_check_branch
      %18 = sbr.rel (0) target = $region5
    $region4: #{tpu_custom_call.1} parent=1 // pred_region
      %s20 = ssub.s32 2048, 2048
      %21 = vsyncadd [#allocation3], %s20
      %s22 = sshll.u32 [#allocation2], 4
      %s23 = int_to_ptr.vmem [resolvable:$true] %s22
      %28 = dma.hbm_to_vmem [thread:$0]  %s0, 2048, %s23, [#allocation3], 128, 128, 8
    $region5: #{tpu_custom_call.1} parent=1 // pred_fallthru
      _
    // Predicated region
    $region6: #{tpu_custom_call.1} parent=1 // pred_check
      _
    $region7: #{tpu_custom_call.1} parent=1 // pred_check_branch
      %30 = sbr.rel (0) target = $region9
    $region8: #{tpu_custom_call.1} parent=1 // pred_region
      %s32 = ssub.s32 128, 128
      %33 = vsyncadd [#allocation6], %s32
      %s35 = sshll.u32 [#allocation5], 4
      %s36 = int_to_ptr.vmem [resolvable:$true] %s35
      %38 = dma.hbm_to_vmem [thread:$0]  %s1, 128, %s36, [#allocation6]
    $region9: #{tpu_custom_call.1} parent=1 // pred_fallthru
      _
    // Predicated region
    $region10: #{tpu_custom_call.1} parent=1 // pred_check
      _
    $region11: #{tpu_custom_call.1} parent=1 // pred_check_branch
      %40 = sbr.rel (0) target = $region13
    $region12: #{tpu_custom_call.1} parent=1 // pred_region
      %s42 = ssub.s32 256, 256
      %43 = vsyncadd [#allocation6], %s42
      %s44 = sshll.u32 [#allocation7], 4
      %s45 = int_to_ptr.vmem [resolvable:$true] %s44
      %50 = dma.hbm_to_vmem [thread:$0]  %s2, 256, %s45, [#allocation6], 128, 128, 8
    $region13: #{tpu_custom_call.1} parent=1 // pred_fallthru
      _
    // Predicated region
    $region14: #{tpu_custom_call.1} parent=1 // pred_check
      _
    $region15: #{tpu_custom_call.1} parent=1 // pred_check_branch
      %52 = sbr.rel (0) target = $region17
    $region16: #{tpu_custom_call.1} parent=1 // pred_region
      %s54 = ssub.s32 256, 256
      %55 = vsyncadd [#allocation9], %s54
      %s56 = sshll.u32 [#allocation8], 4
      %s57 = int_to_ptr.vmem [resolvable:$true] %s56
      %62 = dma.hbm_to_vmem [thread:$0]  %s3, 256, %s57, [#allocation9], 128, 128, 8
    $region17: #{tpu_custom_call.1} parent=1 // pred_fallthru
      _
    // Predicated region
    $region18: #{tpu_custom_call.1} parent=1 // pred_check
      _
    $region19: #{tpu_custom_call.1} parent=1 // pred_check_branch
      %64 = sbr.rel (0) target = $region21
    $region20: #{tpu_custom_call.1} parent=1 // pred_region
      %65 = dma.done [#allocation3], 2048
    $region21: #{tpu_custom_call.1} parent=1 // pred_fallthru
      _
    // Predicated region
    $region22: #{tpu_custom_call.1} parent=1 // pred_check
      _
    $region23: #{tpu_custom_call.1} parent=1 // pred_check_branch
      %67 = sbr.rel (0) target = $region25
    $region24: #{tpu_custom_call.1} parent=1 // pred_region
      %68 = dma.done [#allocation6], 128
    $region25: #{tpu_custom_call.1} parent=1 // pred_fallthru
      _
    // Predicated region
    $region26: #{tpu_custom_call.1} parent=1 // pred_check
      _
    $region27: #{tpu_custom_call.1} parent=1 // pred_check_branch
      %70 = sbr.rel (0) target = $region29
    $region28: #{tpu_custom_call.1} parent=1 // pred_region
      %71 = dma.done [#allocation6], 256
    $region29: #{tpu_custom_call.1} parent=1 // pred_fallthru
      _
    // Predicated region
    $region30: #{tpu_custom_call.1} parent=1 // pred_check
      _
    $region31: #{tpu_custom_call.1} parent=1 // pred_check_branch
      %73 = sbr.rel (0) target = $region33
    $region32: #{tpu_custom_call.1} parent=1 // pred_region
      %74 = dma.done [#allocation9], 256
    $region33: #{tpu_custom_call.1} parent=1 // pred_fallthru
      _
    %v76 = vld [vmem:[#allocation2] sm:$0xff]
    %v77 = vld [vmem:[#allocation2 + $0x8] sm:$0xff]
    %v78 = vld [vmem:[#allocation2 + $0x10] sm:$0xff]
    %v79 = vld [vmem:[#allocation2 + $0x18] sm:$0xff]
    %v80 = vld [vmem:[#allocation2 + $0x20] sm:$0xff]
    %v81 = vld [vmem:[#allocation2 + $0x28] sm:$0xff]
    %v82 = vld [vmem:[#allocation2 + $0x30] sm:$0xff]
    %v83 = vld [vmem:[#allocation2 + $0x38] sm:$0xff]
    %v84 = vld [vmem:[#allocation2 + $0x40] sm:$0xff]
    %v85 = vld [vmem:[#allocation2 + $0x48] sm:$0xff]
    %v86 = vld [vmem:[#allocation2 + $0x50] sm:$0xff]
    %v87 = vld [vmem:[#allocation2 + $0x58] sm:$0xff]
    %v88 = vld [vmem:[#allocation2 + $0x60] sm:$0xff]
    %v89 = vld [vmem:[#allocation2 + $0x68] sm:$0xff]
    %v90 = vld [vmem:[#allocation2 + $0x70] sm:$0xff]
    %v91 = vld [vmem:[#allocation2 + $0x78] sm:$0xff]
    %v92 = vpack.c.bf16 %v77, %v76
    %v93 = vpack.c.bf16 %v79, %v78
    %v94 = vpack.c.bf16 %v81, %v80
    %v95 = vpack.c.bf16 %v83, %v82
    %v96 = vpack.c.bf16 %v85, %v84
    %v97 = vpack.c.bf16 %v87, %v86
    %v98 = vpack.c.bf16 %v89, %v88
    %v99 = vpack.c.bf16 %v91, %v90
    %v100 = vld [vmem:[#allocation5] sm:$0xff]
    %v101 = vpack.c.bf16 %v100, %v100
    %vm102 = vcmask 64512
    %v104 = vsel %vm102, %v92, 0
    %v107 = vsel %vm102, %v93, 0
    %v110 = vsel %vm102, %v94, 0
    %v113 = vsel %vm102, %v95, 0
    %v116 = vsel %vm102, %v96, 0
    %v119 = vsel %vm102, %v97, 0
    %v122 = vsel %vm102, %v98, 0
    %v125 = vsel %vm102, %v99, 0
    %vm127 = vcmask 1043456
    %v129 = vsel %vm127, %v101, 0
    %131 = vmatprep.subr.bf16.mxu0 0
    %132 = vmatpush1.bf16.msra.mxu0 %v129
    %133 = vmatprep.subr.bf16.mxu0 0
    %134 = vmatpush1.bf16.msra.mxu0 0
    %135 = vmatprep.subr.bf16.mxu0 0
    %136 = vmatpush1.bf16.msra.mxu0 0
    %137 = vmatprep.subr.bf16.mxu0 0
    %138 = vmatpush1.bf16.msra.mxu0 0
    %139 = vmatprep.subr.bf16.mxu0 0
    %140 = vmatpush1.bf16.msra.mxu0 0
    %141 = vmatprep.subr.bf16.mxu0 0
    %142 = vmatpush1.bf16.msra.mxu0 0
    %143 = vmatprep.subr.bf16.mxu0 0
    %144 = vmatpush1.bf16.msra.mxu0 0
    %145 = vmatprep.subr.bf16.mxu0 0
    %146 = vmatpush1.bf16.msra.mxu0 0
    %147 = vmatprep.subr.bf16.mxu0 0
    %148 = vmatpush1.bf16.msra.mxu0 0
    %149 = vmatprep.subr.bf16.mxu0 0
    %150 = vmatpush1.bf16.msra.mxu0 0
    %151 = vmatprep.subr.bf16.mxu0 0
    %152 = vmatpush1.bf16.msra.mxu0 0
    %153 = vmatprep.subr.bf16.mxu0 0
    %154 = vmatpush1.bf16.msra.mxu0 0
    %155 = vmatprep.subr.bf16.mxu0 0
    %156 = vmatpush1.bf16.msra.mxu0 0
    %157 = vmatprep.subr.bf16.mxu0 0
    %158 = vmatpush1.bf16.msra.mxu0 0
    %159 = vmatprep.subr.bf16.mxu0 0
    %160 = vmatpush1.bf16.msra.mxu0 0
    %161 = vmatprep.subr.bf16.mxu0 0
    %162 = vmatpush1.bf16.msra.mxu0 0
    %163 = vmatprep.mubr.bf16.mxu0 0
    %164 = vmatmul.mubr.bf16.gmra.mrb[0].mxu0 %v104
    %v165 = vpop.f32.mrb[0].mxu0
    %v166 = vadd.f32 0.0, %v165
    %v167 = vpop.f32.mrb[0].mxu0
    %v168 = vpop.f32.mrb[0].mxu0
    %v169 = vadd.f32 0.0, %v168
    %v170 = vpop.f32.mrb[0].mxu0
    %171 = vmatprep.mubr.bf16.mxu0 0
    %172 = vmatmul.mubr.bf16.gmra.mrb[0].mxu0 %v107
    %v173 = vpop.f32.mrb[0].mxu0
    %v174 = vadd.f32 0.0, %v173
    %v175 = vpop.f32.mrb[0].mxu0
    %v176 = vpop.f32.mrb[0].mxu0
    %v177 = vadd.f32 0.0, %v176
    %v178 = vpop.f32.mrb[0].mxu0
    %179 = vmatprep.mubr.bf16.mxu0 0
    %180 = vmatmul.mubr.bf16.gmra.mrb[0].mxu0 %v110
    %v181 = vpop.f32.mrb[0].mxu0
    %v182 = vadd.f32 0.0, %v181
    %v183 = vpop.f32.mrb[0].mxu0
    %v184 = vpop.f32.mrb[0].mxu0
    %v185 = vadd.f32 0.0, %v184
    %v186 = vpop.f32.mrb[0].mxu0
    %187 = vmatprep.mubr.bf16.mxu0 0
    %188 = vmatmul.mubr.bf16.gmra.mrb[0].mxu0 %v113
    %v189 = vpop.f32.mrb[0].mxu0
    %v190 = vadd.f32 0.0, %v189
    %v191 = vpop.f32.mrb[0].mxu0
    %v192 = vpop.f32.mrb[0].mxu0
    %v193 = vadd.f32 0.0, %v192
    %v194 = vpop.f32.mrb[0].mxu0
    %195 = vmatprep.mubr.bf16.mxu0 0
    %196 = vmatmul.mubr.bf16.gmra.mrb[0].mxu0 %v116
    %v197 = vpop.f32.mrb[0].mxu0
    %v198 = vadd.f32 0.0, %v197
    %v199 = vpop.f32.mrb[0].mxu0
    %v200 = vpop.f32.mrb[0].mxu0
    %v201 = vadd.f32 0.0, %v200
    %v202 = vpop.f32.mrb[0].mxu0
    %203 = vmatprep.mubr.bf16.mxu0 0
    %204 = vmatmul.mubr.bf16.gmra.mrb[0].mxu0 %v119
    %v205 = vpop.f32.mrb[0].mxu0
    %v206 = vadd.f32 0.0, %v205
    %v207 = vpop.f32.mrb[0].mxu0
    %v208 = vpop.f32.mrb[0].mxu0
    %v209 = vadd.f32 0.0, %v208
    %v210 = vpop.f32.mrb[0].mxu0
    %211 = vmatprep.mubr.bf16.mxu0 0
    %212 = vmatmul.mubr.bf16.gmra.mrb[0].mxu0 %v122
    %v213 = vpop.f32.mrb[0].mxu0
    %v214 = vadd.f32 0.0, %v213
    %v215 = vpop.f32.mrb[0].mxu0
    %v216 = vpop.f32.mrb[0].mxu0
    %v217 = vadd.f32 0.0, %v216
    %v218 = vpop.f32.mrb[0].mxu0
    %219 = vmatprep.mubr.bf16.mxu0 0
    %220 = vmatmul.mubr.bf16.gmra.mrb[0].mxu0 %v125
    %v221 = vpop.f32.mrb[0].mxu0
    %v222 = vadd.f32 0.0, %v221
    %v223 = vpop.f32.mrb[0].mxu0
    %v224 = vpop.f32.mrb[0].mxu0
    %v225 = vadd.f32 0.0, %v224
    %v226 = vpop.f32.mrb[0].mxu0
    %227 = vdwg.mxu0
    %v228 = vpack.c.bf16 %v169, %v166
    %v229 = vpack.c.bf16 %v177, %v174
    %v230 = vpack.c.bf16 %v185, %v182
    %v231 = vpack.c.bf16 %v193, %v190
    %v232 = vpack.c.bf16 %v201, %v198
    %v233 = vpack.c.bf16 %v209, %v206
    %v234 = vpack.c.bf16 %v217, %v214
    %v235 = vpack.c.bf16 %v225, %v222
    %v244 = vunpack.c.l.b16 %v228
    %v245 = vunpack.c.h.b16 %v228
    %v246 = vunpack.c.l.b16 %v229
    %v247 = vunpack.c.h.b16 %v229
    %v248 = vunpack.c.l.b16 %v230
    %v249 = vunpack.c.h.b16 %v230
    %v250 = vunpack.c.l.b16 %v231
    %v251 = vunpack.c.h.b16 %v231
    %v252 = vunpack.c.l.b16 %v232
    %v253 = vunpack.c.h.b16 %v232
    %v254 = vunpack.c.l.b16 %v233
    %v255 = vunpack.c.h.b16 %v233
    %v256 = vunpack.c.l.b16 %v234
    %v257 = vunpack.c.h.b16 %v234
    %v258 = vunpack.c.l.b16 %v235
    %v259 = vunpack.c.h.b16 %v235
    %v260 = vpack.c.b16 %v244, %v244
    %v261 = vpack.c.b16 %v245, %v245
    %v262 = vpack.c.b16 %v246, %v246
    %v263 = vpack.c.b16 %v247, %v247
    %v264 = vpack.c.b16 %v248, %v248
    %v265 = vpack.c.b16 %v249, %v249
    %v266 = vpack.c.b16 %v250, %v250
    %v267 = vpack.c.b16 %v251, %v251
    %v268 = vpack.c.b16 %v252, %v252
    %v269 = vpack.c.b16 %v253, %v253
    %v270 = vpack.c.b16 %v254, %v254
    %v271 = vpack.c.b16 %v255, %v255
    %v272 = vpack.c.b16 %v256, %v256
    %v273 = vpack.c.b16 %v257, %v257
    %v274 = vpack.c.b16 %v258, %v258
    %v275 = vpack.c.b16 %v259, %v259
    %vm292 = vcmask 125952
    %293 = vst.msk [vmem:[#allocation10] sm:$0xf] %vm292, %v260
    %294 = vst.msk [vmem:[#allocation10 + $0x4] sm:$0xf] %vm292, %v261
    %295 = vst.msk [vmem:[#allocation10 + $0x8] sm:$0xf] %vm292, %v262
    %296 = vst.msk [vmem:[#allocation10 + $0xc] sm:$0xf] %vm292, %v263
    %297 = vst.msk [vmem:[#allocation10 + $0x10] sm:$0xf] %vm292, %v264
    %298 = vst.msk [vmem:[#allocation10 + $0x14] sm:$0xf] %vm292, %v265
    %299 = vst.msk [vmem:[#allocation10 + $0x18] sm:$0xf] %vm292, %v266
    %300 = vst.msk [vmem:[#allocation10 + $0x1c] sm:$0xf] %vm292, %v267
    %301 = vst.msk [vmem:[#allocation10 + $0x20] sm:$0xf] %vm292, %v268
    %302 = vst.msk [vmem:[#allocation10 + $0x24] sm:$0xf] %vm292, %v269
    %303 = vst.msk [vmem:[#allocation10 + $0x28] sm:$0xf] %vm292, %v270
    %304 = vst.msk [vmem:[#allocation10 + $0x2c] sm:$0xf] %vm292, %v271
    %305 = vst.msk [vmem:[#allocation10 + $0x30] sm:$0xf] %vm292, %v272
    %306 = vst.msk [vmem:[#allocation10 + $0x34] sm:$0xf] %vm292, %v273
    %307 = vst.msk [vmem:[#allocation10 + $0x38] sm:$0xf] %vm292, %v274
    %308 = vst.msk [vmem:[#allocation10 + $0x3c] sm:$0xf] %vm292, %v275
    %v309 = vld [vmem:[#allocation7] sm:$0xff]
    %v310 = vld [vmem:[#allocation7 + $0x8] sm:$0xff]
    %vm311 = vcmask 130048
    %v313 = vsel %vm311, %v166, 0
    %v316 = vsel %vm311, %v169, 0
    %v319 = vsel %vm311, %v174, 0
    %v322 = vsel %vm311, %v177, 0
    %v325 = vsel %vm311, %v182, 0
    %v328 = vsel %vm311, %v185, 0
    %v331 = vsel %vm311, %v190, 0
    %v334 = vsel %vm311, %v193, 0
    %v337 = vsel %vm311, %v198, 0
    %v340 = vsel %vm311, %v201, 0
    %v343 = vsel %vm311, %v206, 0
    %v346 = vsel %vm311, %v209, 0
    %v349 = vsel %vm311, %v214, 0
    %v352 = vsel %vm311, %v217, 0
    %v355 = vsel %vm311, %v222, 0
    %v358 = vsel %vm311, %v225, 0
    %360 = vmatprep.subr.mxu0 0.0
    %361 = vmatpush1.msra.mxu0 %v309
    %362 = vmatprep.subr.mxu0 0.0
    %363 = vmatpush1.msra.mxu0 %v310
    %364 = vmatprep.subr.mxu0 0.0
    %365 = vmatpush1.msra.mxu0 0.0
    %366 = vmatprep.subr.mxu0 0.0
    %367 = vmatpush1.msra.mxu0 0.0
    %368 = vmatprep.subr.mxu0 0.0
    %369 = vmatpush1.msra.mxu0 0.0
    %370 = vmatprep.subr.mxu0 0.0
    %371 = vmatpush1.msra.mxu0 0.0
    %372 = vmatprep.subr.mxu0 0.0
    %373 = vmatpush1.msra.mxu0 0.0
    %374 = vmatprep.subr.mxu0 0.0
    %375 = vmatpush1.msra.mxu0 0.0
    %376 = vmatprep.subr.mxu0 0.0
    %377 = vmatpush1.msra.mxu0 0.0
    %378 = vmatprep.subr.mxu0 0.0
    %379 = vmatpush1.msra.mxu0 0.0
    %380 = vmatprep.subr.mxu0 0.0
    %381 = vmatpush1.msra.mxu0 0.0
    %382 = vmatprep.subr.mxu0 0.0
    %383 = vmatpush1.msra.mxu0 0.0
    %384 = vmatprep.subr.mxu0 0.0
    %385 = vmatpush1.msra.mxu0 0.0
    %386 = vmatprep.subr.mxu0 0.0
    %387 = vmatpush1.msra.mxu0 0.0
    %388 = vmatprep.subr.mxu0 0.0
    %389 = vmatpush1.msra.mxu0 0.0
    %390 = vmatprep.subr.mxu0 0.0
    %391 = vmatpush1.msra.mxu0 0.0
    %392 = vmatprep.subr.mxu0 0.0
    %393 = vmatpush1.msra.mxu0 0.0
    %394 = vmatprep.subr.mxu0 0.0
    %395 = vmatpush1.msra.mxu0 0.0
    %396 = vmatprep.subr.mxu0 0.0
    %397 = vmatpush1.msra.mxu0 0.0
    %398 = vmatprep.subr.mxu0 0.0
    %399 = vmatpush1.msra.mxu0 0.0
    %400 = vmatprep.subr.mxu0 0.0
    %401 = vmatpush1.msra.mxu0 0.0
    %402 = vmatprep.subr.mxu0 0.0
    %403 = vmatpush1.msra.mxu0 0.0
    %404 = vmatprep.subr.mxu0 0.0
    %405 = vmatpush1.msra.mxu0 0.0
    %406 = vmatprep.subr.mxu0 0.0
    %407 = vmatpush1.msra.mxu0 0.0
    %408 = vmatprep.subr.mxu0 0.0
    %409 = vmatpush1.msra.mxu0 0.0
    %410 = vmatprep.subr.mxu0 0.0
    %411 = vmatpush1.msra.mxu0 0.0
    %412 = vmatprep.subr.mxu0 0.0
    %413 = vmatpush1.msra.mxu0 0.0
    %414 = vmatprep.subr.mxu0 0.0
    %415 = vmatpush1.msra.mxu0 0.0
    %416 = vmatprep.subr.mxu0 0.0
    %417 = vmatpush1.msra.mxu0 0.0
    %418 = vmatprep.subr.mxu0 0.0
    %419 = vmatpush1.msra.mxu0 0.0
    %420 = vmatprep.subr.mxu0 0.0
    %421 = vmatpush1.msra.mxu0 0.0
    %422 = vmatprep.subr.mxu0 0.0
    %423 = vmatpush1.msra.mxu0 0.0
    %424 = vmatprep.mubr.f32.mxu0 0.0
    %425 = vmatmul.mubr.f32.gmra.mrb[0].mxu0 %v313
    %v426 = vpop.f32.mrb[0].mxu0
    %v427 = vadd.f32 0.0, %v426
    %v428 = vpop.f32.mrb[0].mxu0
    %429 = vmatprep.mubr.f32.mxu0 0.0
    %430 = vmatmul.mubr.f32.gmra.mrb[0].mxu0 %v316
    %v431 = vpop.f32.mrb[0].mxu0
    %v432 = vadd.f32 0.0, %v431
    %v433 = vpop.f32.mrb[0].mxu0
    %434 = vmatprep.mubr.f32.mxu0 0.0
    %435 = vmatmul.mubr.f32.gmra.mrb[0].mxu0 %v319
    %v436 = vpop.f32.mrb[0].mxu0
    %v437 = vadd.f32 0.0, %v436
    %v438 = vpop.f32.mrb[0].mxu0
    %439 = vmatprep.mubr.f32.mxu0 0.0
    %440 = vmatmul.mubr.f32.gmra.mrb[0].mxu0 %v322
    %v441 = vpop.f32.mrb[0].mxu0
    %v442 = vadd.f32 0.0, %v441
    %v443 = vpop.f32.mrb[0].mxu0
    %444 = vmatprep.mubr.f32.mxu0 0.0
    %445 = vmatmul.mubr.f32.gmra.mrb[0].mxu0 %v325
    %v446 = vpop.f32.mrb[0].mxu0
    %v447 = vadd.f32 0.0, %v446
    %v448 = vpop.f32.mrb[0].mxu0
    %449 = vmatprep.mubr.f32.mxu0 0.0
    %450 = vmatmul.mubr.f32.gmra.mrb[0].mxu0 %v328
    %v451 = vpop.f32.mrb[0].mxu0
    %v452 = vadd.f32 0.0, %v451
    %v453 = vpop.f32.mrb[0].mxu0
    %454 = vmatprep.mubr.f32.mxu0 0.0
    %455 = vmatmul.mubr.f32.gmra.mrb[0].mxu0 %v331
    %v456 = vpop.f32.mrb[0].mxu0
    %v457 = vadd.f32 0.0, %v456
    %v458 = vpop.f32.mrb[0].mxu0
    %459 = vmatprep.mubr.f32.mxu0 0.0
    %460 = vmatmul.mubr.f32.gmra.mrb[0].mxu0 %v334
    %v461 = vpop.f32.mrb[0].mxu0
    %v462 = vadd.f32 0.0, %v461
    %v463 = vpop.f32.mrb[0].mxu0
    %464 = vmatprep.mubr.f32.mxu0 0.0
    %465 = vmatmul.mubr.f32.gmra.mrb[0].mxu0 %v337
    %v466 = vpop.f32.mrb[0].mxu0
    %v467 = vadd.f32 0.0, %v466
    %v468 = vpop.f32.mrb[0].mxu0
    %469 = vmatprep.mubr.f32.mxu0 0.0
    %470 = vmatmul.mubr.f32.gmra.mrb[0].mxu0 %v340
    %v471 = vpop.f32.mrb[0].mxu0
    %v472 = vadd.f32 0.0, %v471
    %v473 = vpop.f32.mrb[0].mxu0
    %474 = vmatprep.mubr.f32.mxu0 0.0
    %475 = vmatmul.mubr.f32.gmra.mrb[0].mxu0 %v343
    %v476 = vpop.f32.mrb[0].mxu0
    %v477 = vadd.f32 0.0, %v476
    %v478 = vpop.f32.mrb[0].mxu0
    %479 = vmatprep.mubr.f32.mxu0 0.0
    %480 = vmatmul.mubr.f32.gmra.mrb[0].mxu0 %v346
    %v481 = vpop.f32.mrb[0].mxu0
    %v482 = vadd.f32 0.0, %v481
    %v483 = vpop.f32.mrb[0].mxu0
    %484 = vmatprep.mubr.f32.mxu0 0.0
    %485 = vmatmul.mubr.f32.gmra.mrb[0].mxu0 %v349
    %v486 = vpop.f32.mrb[0].mxu0
    %v487 = vadd.f32 0.0, %v486
    %v488 = vpop.f32.mrb[0].mxu0
    %489 = vmatprep.mubr.f32.mxu0 0.0
    %490 = vmatmul.mubr.f32.gmra.mrb[0].mxu0 %v352
    %v491 = vpop.f32.mrb[0].mxu0
    %v492 = vadd.f32 0.0, %v491
    %v493 = vpop.f32.mrb[0].mxu0
    %494 = vmatprep.mubr.f32.mxu0 0.0
    %495 = vmatmul.mubr.f32.gmra.mrb[0].mxu0 %v355
    %v496 = vpop.f32.mrb[0].mxu0
    %v497 = vadd.f32 0.0, %v496
    %v498 = vpop.f32.mrb[0].mxu0
    %499 = vmatprep.mubr.f32.mxu0 0.0
    %500 = vmatmul.mubr.f32.gmra.mrb[0].mxu0 %v358
    %v501 = vpop.f32.mrb[0].mxu0
    %v502 = vadd.f32 0.0, %v501
    %v503 = vpop.f32.mrb[0].mxu0
    %504 = vdwg.mxu0
    %vm505 = vcmask 15360
    %506 = vst.msk [vmem:[#allocation11] sm:$0xff] %vm505, %v427
    %507 = vst.msk [vmem:[#allocation11 + $0x8] sm:$0xff] %vm505, %v432
    %508 = vst.msk [vmem:[#allocation11 + $0x10] sm:$0xff] %vm505, %v437
    %509 = vst.msk [vmem:[#allocation11 + $0x18] sm:$0xff] %vm505, %v442
    %510 = vst.msk [vmem:[#allocation11 + $0x20] sm:$0xff] %vm505, %v447
    %511 = vst.msk [vmem:[#allocation11 + $0x28] sm:$0xff] %vm505, %v452
    %512 = vst.msk [vmem:[#allocation11 + $0x30] sm:$0xff] %vm505, %v457
    %513 = vst.msk [vmem:[#allocation11 + $0x38] sm:$0xff] %vm505, %v462
    %514 = vst.msk [vmem:[#allocation11 + $0x40] sm:$0xff] %vm505, %v467
    %515 = vst.msk [vmem:[#allocation11 + $0x48] sm:$0xff] %vm505, %v472
    %516 = vst.msk [vmem:[#allocation11 + $0x50] sm:$0xff] %vm505, %v477
    %517 = vst.msk [vmem:[#allocation11 + $0x58] sm:$0xff] %vm505, %v482
    %518 = vst.msk [vmem:[#allocation11 + $0x60] sm:$0xff] %vm505, %v487
    %519 = vst.msk [vmem:[#allocation11 + $0x68] sm:$0xff] %vm505, %v492
    %520 = vst.msk [vmem:[#allocation11 + $0x70] sm:$0xff] %vm505, %v497
    %521 = vst.msk [vmem:[#allocation11 + $0x78] sm:$0xff] %vm505, %v502
    %v522 = vld [vmem:[#allocation8] sm:$0xff]
    %v523 = vld [vmem:[#allocation8 + $0x8] sm:$0xff]
    %524 = vmatprep.subr.mxu0 0.0
    %525 = vmatpush1.msra.mxu0 %v522
    %526 = vmatprep.subr.mxu0 0.0
    %527 = vmatpush1.msra.mxu0 %v523
    %528 = vmatprep.subr.mxu0 0.0
    %529 = vmatpush1.msra.mxu0 0.0
    %530 = vmatprep.subr.mxu0 0.0
    %531 = vmatpush1.msra.mxu0 0.0
    %532 = vmatprep.subr.mxu0 0.0
    %533 = vmatpush1.msra.mxu0 0.0
    %534 = vmatprep.subr.mxu0 0.0
    %535 = vmatpush1.msra.mxu0 0.0
    %536 = vmatprep.subr.mxu0 0.0
    %537 = vmatpush1.msra.mxu0 0.0
    %538 = vmatprep.subr.mxu0 0.0
    %539 = vmatpush1.msra.mxu0 0.0
    %540 = vmatprep.subr.mxu0 0.0
    %541 = vmatpush1.msra.mxu0 0.0
    %542 = vmatprep.subr.mxu0 0.0
    %543 = vmatpush1.msra.mxu0 0.0
    %544 = vmatprep.subr.mxu0 0.0
    %545 = vmatpush1.msra.mxu0 0.0
    %546 = vmatprep.subr.mxu0 0.0
    %547 = vmatpush1.msra.mxu0 0.0
    %548 = vmatprep.subr.mxu0 0.0
    %549 = vmatpush1.msra.mxu0 0.0
    %550 = vmatprep.subr.mxu0 0.0
    %551 = vmatpush1.msra.mxu0 0.0
    %552 = vmatprep.subr.mxu0 0.0
    %553 = vmatpush1.msra.mxu0 0.0
    %554 = vmatprep.subr.mxu0 0.0
    %555 = vmatpush1.msra.mxu0 0.0
    %556 = vmatprep.subr.mxu0 0.0
    %557 = vmatpush1.msra.mxu0 0.0
    %558 = vmatprep.subr.mxu0 0.0
    %559 = vmatpush1.msra.mxu0 0.0
    %560 = vmatprep.subr.mxu0 0.0
    %561 = vmatpush1.msra.mxu0 0.0
    %562 = vmatprep.subr.mxu0 0.0
    %563 = vmatpush1.msra.mxu0 0.0
    %564 = vmatprep.subr.mxu0 0.0
    %565 = vmatpush1.msra.mxu0 0.0
    %566 = vmatprep.subr.mxu0 0.0
    %567 = vmatpush1.msra.mxu0 0.0
    %568 = vmatprep.subr.mxu0 0.0
    %569 = vmatpush1.msra.mxu0 0.0
    %570 = vmatprep.subr.mxu0 0.0
    %571 = vmatpush1.msra.mxu0 0.0
    %572 = vmatprep.subr.mxu0 0.0
    %573 = vmatpush1.msra.mxu0 0.0
    %574 = vmatprep.subr.mxu0 0.0
    %575 = vmatpush1.msra.mxu0 0.0
    %576 = vmatprep.subr.mxu0 0.0
    %577 = vmatpush1.msra.mxu0 0.0
    %578 = vmatprep.subr.mxu0 0.0
    %579 = vmatpush1.msra.mxu0 0.0
    %580 = vmatprep.subr.mxu0 0.0
    %581 = vmatpush1.msra.mxu0 0.0
    %582 = vmatprep.subr.mxu0 0.0
    %583 = vmatpush1.msra.mxu0 0.0
    %584 = vmatprep.subr.mxu0 0.0
    %585 = vmatpush1.msra.mxu0 0.0
    %586 = vmatprep.subr.mxu0 0.0
    %587 = vmatpush1.msra.mxu0 0.0
    %588 = vmatprep.mubr.f32.mxu0 0.0
    %589 = vmatmul.mubr.f32.gmra.mrb[0].mxu0 %v313
    %v590 = vpop.f32.mrb[0].mxu0
    %v591 = vadd.f32 0.0, %v590
    %v592 = vpop.f32.mrb[0].mxu0
    %593 = vmatprep.mubr.f32.mxu0 0.0
    %594 = vmatmul.mubr.f32.gmra.mrb[0].mxu0 %v316
    %v595 = vpop.f32.mrb[0].mxu0
    %v596 = vadd.f32 0.0, %v595
    %v597 = vpop.f32.mrb[0].mxu0
    %598 = vmatprep.mubr.f32.mxu0 0.0
    %599 = vmatmul.mubr.f32.gmra.mrb[0].mxu0 %v319
    %v600 = vpop.f32.mrb[0].mxu0
    %v601 = vadd.f32 0.0, %v600
    %v602 = vpop.f32.mrb[0].mxu0
    %603 = vmatprep.mubr.f32.mxu0 0.0
    %604 = vmatmul.mubr.f32.gmra.mrb[0].mxu0 %v322
    %v605 = vpop.f32.mrb[0].mxu0
    %v606 = vadd.f32 0.0, %v605
    %v607 = vpop.f32.mrb[0].mxu0
    %608 = vmatprep.mubr.f32.mxu0 0.0
    %609 = vmatmul.mubr.f32.gmra.mrb[0].mxu0 %v325
    %v610 = vpop.f32.mrb[0].mxu0
    %v611 = vadd.f32 0.0, %v610
    %v612 = vpop.f32.mrb[0].mxu0
    %613 = vmatprep.mubr.f32.mxu0 0.0
    %614 = vmatmul.mubr.f32.gmra.mrb[0].mxu0 %v328
    %v615 = vpop.f32.mrb[0].mxu0
    %v616 = vadd.f32 0.0, %v615
    %v617 = vpop.f32.mrb[0].mxu0
    %618 = vmatprep.mubr.f32.mxu0 0.0
    %619 = vmatmul.mubr.f32.gmra.mrb[0].mxu0 %v331
    %v620 = vpop.f32.mrb[0].mxu0
    %v621 = vadd.f32 0.0, %v620
    %v622 = vpop.f32.mrb[0].mxu0
    %623 = vmatprep.mubr.f32.mxu0 0.0
    %624 = vmatmul.mubr.f32.gmra.mrb[0].mxu0 %v334
    %v625 = vpop.f32.mrb[0].mxu0
    %v626 = vadd.f32 0.0, %v625
    %v627 = vpop.f32.mrb[0].mxu0
    %628 = vmatprep.mubr.f32.mxu0 0.0
    %629 = vmatmul.mubr.f32.gmra.mrb[0].mxu0 %v337
    %v630 = vpop.f32.mrb[0].mxu0
    %v631 = vadd.f32 0.0, %v630
    %v632 = vpop.f32.mrb[0].mxu0
    %633 = vmatprep.mubr.f32.mxu0 0.0
    %634 = vmatmul.mubr.f32.gmra.mrb[0].mxu0 %v340
    %v635 = vpop.f32.mrb[0].mxu0
    %v636 = vadd.f32 0.0, %v635
    %v637 = vpop.f32.mrb[0].mxu0
    %638 = vmatprep.mubr.f32.mxu0 0.0
    %639 = vmatmul.mubr.f32.gmra.mrb[0].mxu0 %v343
    %v640 = vpop.f32.mrb[0].mxu0
    %v641 = vadd.f32 0.0, %v640
    %v642 = vpop.f32.mrb[0].mxu0
    %643 = vmatprep.mubr.f32.mxu0 0.0
    %644 = vmatmul.mubr.f32.gmra.mrb[0].mxu0 %v346
    %v645 = vpop.f32.mrb[0].mxu0
    %v646 = vadd.f32 0.0, %v645
    %v647 = vpop.f32.mrb[0].mxu0
    %648 = vmatprep.mubr.f32.mxu0 0.0
    %649 = vmatmul.mubr.f32.gmra.mrb[0].mxu0 %v349
    %v650 = vpop.f32.mrb[0].mxu0
    %v651 = vadd.f32 0.0, %v650
    %v652 = vpop.f32.mrb[0].mxu0
    %653 = vmatprep.mubr.f32.mxu0 0.0
    %654 = vmatmul.mubr.f32.gmra.mrb[0].mxu0 %v352
    %v655 = vpop.f32.mrb[0].mxu0
    %v656 = vadd.f32 0.0, %v655
    %v657 = vpop.f32.mrb[0].mxu0
    %658 = vmatprep.mubr.f32.mxu0 0.0
    %659 = vmatmul.mubr.f32.gmra.mrb[0].mxu0 %v355
    %v660 = vpop.f32.mrb[0].mxu0
    %v661 = vadd.f32 0.0, %v660
    %v662 = vpop.f32.mrb[0].mxu0
    %663 = vmatprep.mubr.f32.mxu0 0.0
    %664 = vmatmul.mubr.f32.gmra.mrb[0].mxu0 %v358
    %v665 = vpop.f32.mrb[0].mxu0
    %v666 = vadd.f32 0.0, %v665
    %v667 = vpop.f32.mrb[0].mxu0
    %668 = vdwg.mxu0
    %669 = vst.msk [vmem:[#allocation13] sm:$0xff] %vm505, %v591
    %670 = vst.msk [vmem:[#allocation13 + $0x8] sm:$0xff] %vm505, %v596
    %671 = vst.msk [vmem:[#allocation13 + $0x10] sm:$0xff] %vm505, %v601
    %672 = vst.msk [vmem:[#allocation13 + $0x18] sm:$0xff] %vm505, %v606
    %673 = vst.msk [vmem:[#allocation13 + $0x20] sm:$0xff] %vm505, %v611
    %674 = vst.msk [vmem:[#allocation13 + $0x28] sm:$0xff] %vm505, %v616
    %675 = vst.msk [vmem:[#allocation13 + $0x30] sm:$0xff] %vm505, %v621
    %676 = vst.msk [vmem:[#allocation13 + $0x38] sm:$0xff] %vm505, %v626
    %677 = vst.msk [vmem:[#allocation13 + $0x40] sm:$0xff] %vm505, %v631
    %678 = vst.msk [vmem:[#allocation13 + $0x48] sm:$0xff] %vm505, %v636
    %679 = vst.msk [vmem:[#allocation13 + $0x50] sm:$0xff] %vm505, %v641
    %680 = vst.msk [vmem:[#allocation13 + $0x58] sm:$0xff] %vm505, %v646
    %681 = vst.msk [vmem:[#allocation13 + $0x60] sm:$0xff] %vm505, %v651
    %682 = vst.msk [vmem:[#allocation13 + $0x68] sm:$0xff] %vm505, %v656
    %683 = vst.msk [vmem:[#allocation13 + $0x70] sm:$0xff] %vm505, %v661
    %684 = vst.msk [vmem:[#allocation13 + $0x78] sm:$0xff] %vm505, %v666
    // Predicated region
    $region34: #{tpu_custom_call.1} parent=1 // pred_check
      _
    $region35: #{tpu_custom_call.1} parent=1 // pred_check_branch
      %686 = sbr.rel (0) target = $region37
    $region36: #{tpu_custom_call.1} parent=1 // pred_region
      %s688 = ssub.s32 1024, 1024
      %689 = vsyncadd [#allocation4], %s688
      %s690 = sshll.u32 [#allocation10], 4
      %s691 = int_to_ptr.vmem [resolvable:$true] %s690
      %696 = dma.vmem_to_hbm [thread:$0]  %s691, 1024, %s4, [#allocation4], 64, 64, 4
    $region37: #{tpu_custom_call.1} parent=1 // pred_fallthru
      _
    // Predicated region
    $region38: #{tpu_custom_call.1} parent=1 // pred_check
      _
    $region39: #{tpu_custom_call.1} parent=1 // pred_check_branch
      %698 = sbr.rel (0) target = $region41
    $region40: #{tpu_custom_call.1} parent=1 // pred_region
      %s700 = ssub.s32 2048, 2048
      %701 = vsyncadd [#allocation12], %s700
      %s702 = sshll.u32 [#allocation11], 4
      %s703 = int_to_ptr.vmem [resolvable:$true] %s702
      %708 = dma.vmem_to_hbm [thread:$0]  %s703, 2048, %s5, [#allocation12], 128, 128, 8
    $region41: #{tpu_custom_call.1} parent=1 // pred_fallthru
      _
    // Predicated region
    $region42: #{tpu_custom_call.1} parent=1 // pred_check
      _
    $region43: #{tpu_custom_call.1} parent=1 // pred_check_branch
      %710 = sbr.rel (0) target = $region45
    $region44: #{tpu_custom_call.1} parent=1 // pred_region
      %s712 = ssub.s32 2048, 2048
      %713 = vsyncadd [#allocation12], %s712
      %s714 = sshll.u32 [#allocation13], 4
      %s715 = int_to_ptr.vmem [resolvable:$true] %s714
      %720 = dma.vmem_to_hbm [thread:$0]  %s715, 2048, %s6, [#allocation12], 128, 128, 8
    $region45: #{tpu_custom_call.1} parent=1 // pred_fallthru
      _
    // Predicated region
    $region46: #{tpu_custom_call.1} parent=1 // pred_check
      _
    $region47: #{tpu_custom_call.1} parent=1 // pred_check_branch
      %722 = sbr.rel (0) target = $region49
    $region48: #{tpu_custom_call.1} parent=1 // pred_region
      %723 = dma.done [#allocation4], 1024
    $region49: #{tpu_custom_call.1} parent=1 // pred_fallthru
      _
    // Predicated region
    $region50: #{tpu_custom_call.1} parent=1 // pred_check
      _
    $region51: #{tpu_custom_call.1} parent=1 // pred_check_branch
      %725 = sbr.rel (0) target = $region53
    $region52: #{tpu_custom_call.1} parent=1 // pred_region
      %726 = dma.done [#allocation12], 2048
    $region53: #{tpu_custom_call.1} parent=1 // pred_fallthru
      _
    // Predicated region
    $region54: #{tpu_custom_call.1} parent=1 // pred_check
      _
    $region55: #{tpu_custom_call.1} parent=1 // pred_check_branch
      %728 = sbr.rel (0) target = $region57
    $region56: #{tpu_custom_call.1} parent=1 // pred_region
      %729 = dma.done [#allocation12], 2048
    $region57: #{tpu_custom_call.1} parent=1 // pred_fallthru
      _
    %730 = vsyncpa [#allocation3], 1
    %731 = vsyncpa [#allocation6], 1
    %732 = vsyncpa [#allocation9], 1
    %733 = vsyncpa [#allocation4], 1
    %734 = vsyncpa [#allocation12], 1

</llo_original>
